<compile_context>
chip_gen: v5e
topology: v5e:2x2
jax: 0.10.0
libtpu: 0.0.40
codegen_flags: <defaults>
</compile_context>

<pallas_src>
import numpy as np
import jax
import jax.numpy as jnp
from jax import lax
from jax.experimental import pallas as pl
from jax.experimental.pallas import tpu as pltpu

STUDENT_TEMP = 0.1
TEACHER_TEMP = 0.02       # hard-coded `temp = 0.02` in the reference forward()
CENTER_MOMENTUM = 0.9


def _pairwise_loss_kernel(pt_ref, ps_ref, outfit_i_ref, outfit_j_ref,
                          is_neg_i_ref, is_last2_j_ref, pos_ref, neg_ref):
    ti = pl.program_id(0)      # teacher-row tile (parallel)
    t_idx = pl.program_id(1)   # teacher chunk   (arbitrary / accumulated)
    s_idx = pl.program_id(2)   # student chunk   (arbitrary / accumulated)

    @pl.when(jnp.logical_and(t_idx == 0, s_idx == 0))
    def _():
        pos_ref[...] = jnp.zeros_like(pos_ref)
        neg_ref[...] = jnp.zeros_like(neg_ref)

    TI = pt_ref.shape[1]       # teacher lane tile width
    NJ = ps_ref.shape[0]       # full student length N

    # pairwise class logits, student j on sublanes, teacher i on lanes:
    #   proj_c[j, i] = pt_c[i] + ps_c[j]   (temps / centering folded into pt, ps on host)
    pt0 = pt_ref[0:1, :]                      # (1, TI)
    pt1 = pt_ref[1:2, :]
    ps0 = ps_ref[:, 0:1]                      # (NJ, 1)
    ps1 = ps_ref[:, 1:2]
    proj0 = ps0 + pt0                         # (NJ, TI)
    proj1 = ps1 + pt1

    # in-kernel mask generation (no N x N mask DMA)
    j_idx = lax.broadcasted_iota(jnp.int32, (NJ, TI), 0)
    i_idx = lax.broadcasted_iota(jnp.int32, (NJ, TI), 1) + ti * TI
    same_outfit = outfit_j_ref[...] == outfit_i_ref[...]          # (NJ,1) vs (1,TI) -> (NJ,TI)
    valid = jnp.logical_and(same_outfit, i_idx != j_idx)
    valid = jnp.logical_and(valid,
                            jnp.logical_or(t_idx != s_idx, j_idx >= i_idx))
    negm = jnp.logical_and(valid,
                           jnp.logical_and(is_neg_i_ref[...] != 0,
                                           is_last2_j_ref[...] != 0))
    posm = jnp.logical_and(valid, jnp.logical_not(negm))

    # single dense -log pass shared by pos/neg; discarded entries guarded to 1.0.
    # TODO(synk): like the PyTorch reference, log() of a non-positive projection on a
    # selected pair is not clamped and would produce NaN/Inf.
    proj = jnp.where(negm, proj0, proj1)
    proj = jnp.where(valid, proj, 1.0)
    nlog = -jnp.log(proj)

    # lane-dense accumulation: reduce over the sublane (student j) axis -> (1, TI)
    pos_ref[...] += jnp.sum(jnp.where(posm, nlog, 0.0), axis=0, keepdims=True)
    neg_ref[...] += jnp.sum(jnp.where(negm, nlog, 0.0), axis=0, keepdims=True)


def pairwise_loss_rows(pt, ps, outfit_i, outfit_j, is_neg_i, is_last2_j, *, ti_tile=None):
    """Per-teacher-index positive / negative -log sums, accumulated over all
    (teacher_chunk, student_chunk) combinations.  Returns two (1, N) f32 arrays.

    pt : (2, 2, N)        per-class teacher projections (temps/center folded in), lane-dense
    ps : (ncrops, N, 2)   per-class student projections (temp folded in)
    outfit_i / is_neg_i   : (1, N) int32  (teacher/lane side)
    outfit_j / is_last2_j : (N, 1) int32  (student/sublane side)
    """
    two, _, N = pt.shape
    ncrops = ps.shape[0]
    TI = N if ti_tile is None else ti_tile
    assert TI == N or (TI % 128 == 0 and N % TI == 0), "teacher tile must be N or 128-aligned"
    grid = (N // TI, two, ncrops)

    return pl.pallas_call(
        _pairwise_loss_kernel,
        out_shape=(jax.ShapeDtypeStruct((1, N), jnp.float32),
                   jax.ShapeDtypeStruct((1, N), jnp.float32)),
        grid_spec=pltpu.PrefetchScalarGridSpec(
            num_scalar_prefetch=0,
            grid=grid,
            in_specs=[
                pl.BlockSpec((pl.Squeezed(), 2, TI), lambda ti, t, s: (t, 0, ti)),   # pt
                pl.BlockSpec((pl.Squeezed(), N, 2), lambda ti, t, s: (s, 0, 0)),     # ps
                pl.BlockSpec((1, TI), lambda ti, t, s: (0, ti)),                     # outfit id (i)
                pl.BlockSpec((N, 1), lambda ti, t, s: (0, 0)),                       # outfit id (j)
                pl.BlockSpec((1, TI), lambda ti, t, s: (0, ti)),                     # sampled-neg flag (i)
                pl.BlockSpec((N, 1), lambda ti, t, s: (0, 0)),                       # last-two flag (j)
            ],
            out_specs=(pl.BlockSpec((1, TI), lambda ti, t, s: (0, ti)),
                       pl.BlockSpec((1, TI), lambda ti, t, s: (0, ti))),
        ),
        compiler_params=pltpu.CompilerParams(
            dimension_semantics=("parallel", "arbitrary", "arbitrary")),
    )(pt, ps, outfit_i, outfit_j, is_neg_i, is_last2_j)


def sample_structure(items_per_outfit, seed=0):
    """Reproduces the host-side negative-pair sampling of the reference forward().
    Returns per-item vectors: outfit id, 'sampled negative i' flag, 'last-two j' flag.
    (i, j) is a negative pair  <=>  same outfit & is_neg[i] & is_last2[j]."""
    np.random.seed(seed)
    N = int(sum(items_per_outfit))
    outfit_of = np.zeros(N, np.int32)
    is_neg = np.zeros(N, np.int32)
    is_last2 = np.zeros(N, np.int32)
    abs_index = 0
    for o, k in enumerate(items_per_outfit):
        outfit_of[abs_index:abs_index + k] = o
        is_last2[abs_index + k - 1] = 1
        is_last2[abs_index + k - 2] = 1
        S = []
        index = np.random.randint(abs_index, abs_index + k - 2)
        S.append(index)
        while index in S:
            index = np.random.randint(abs_index, abs_index + k - 2)
        S.append(index)
        is_neg[S[0]] = 1
        is_neg[S[1]] = 1
        abs_index += k
    return outfit_of, is_neg, is_last2


def project_features(student_output, teacher_output, W, bias, center, ncrops, N, D):
    """Fold temperatures / centering into the split Linear(2D, 2) and precompute the
    tiny per-item class projections (outside the kernel; they are not the hot path)."""
    hi = lax.Precision.HIGHEST
    Wt = W[:, :D].T / TEACHER_TEMP                       # (D, 2), acts on teacher half of cat()
    Ws = W[:, D:].T / STUDENT_TEMP                       # (D, 2), acts on student half
    bias_eff = bias - jnp.matmul(center[0], Wt, precision=hi)        # (2,)
    pt = jnp.einsum('tnd,dc->tnc', teacher_output.reshape(2, N, D), Wt,
                    precision=hi) + bias_eff                          # (2, N, 2)
    ps = jnp.einsum('snd,dc->snc', student_output.reshape(ncrops, N, D), Ws,
                    precision=hi)                                     # (ncrops, N, 2)
    pt = jnp.transpose(pt, (0, 2, 1))                                 # (2, 2, N) lane-dense
    return pt.astype(jnp.float32), ps.astype(jnp.float32)


def l_softmax_forward(student_output, teacher_output, items_per_outfit,
                      W, bias, center, ncrops, seed=0):
    """Full forward: returns (out_loss, new_center)."""
    D = teacher_output.shape[-1]
    items = list(items_per_outfit)
    B = len(items)
    N = int(sum(items))

    outfit_of, is_neg, is_last2 = sample_structure(items, seed=seed)
    pt, ps = project_features(student_output, teacher_output, W, bias, center, ncrops, N, D)

    pos_row, neg_row = pairwise_loss_rows(
        pt, ps,
        jnp.asarray(outfit_of.reshape(1, N)),
        jnp.asarray(outfit_of.reshape(N, 1)),
        jnp.asarray(is_neg.reshape(1, N)),
        jnp.asarray(is_last2.reshape(N, 1)))

    # per-outfit reduction + normalization (glue)
    onehot = jnp.asarray(np.eye(B, dtype=np.float32)[:, outfit_of])  # (B, N)
    pos_o = onehot @ pos_row[0]
    neg_o = onehot @ neg_row[0]
    m, n = 2.0, 2.0
    n_o = jnp.asarray(items, jnp.float32)
    total = pos_o / ((n_o - m) * (n_o - m - 1.0)) + neg_o / (2.0 * n * m)
    out_loss = jnp.sum(total / float(B)) / 20.0

    # update_center (single-device: dist.all_reduce is a no-op)
    # TODO(synk): dist.all_reduce over devices not modeled; local mean only.
    batch_center = jnp.mean(teacher_output, axis=0, keepdims=True)
    new_center = center * CENTER_MOMENTUM + batch_center * (1.0 - CENTER_MOMENTUM)
    return out_loss, new_center


def _reference_rows(student_output, teacher_output, items, W, bias, center, ncrops, structure):
    """Dense numpy reference for the kernel's per-teacher-index pos/neg sums."""
    outfit_of, is_neg, is_last2 = structure
    D = teacher_output.shape[-1]
    N = int(sum(items))
    T = (np.asarray(teacher_output).reshape(2, N, D) - np.asarray(center)) / TEACHER_TEMP
    S = np.asarray(student_output).reshape(ncrops, N, D) / STUDENT_TEMP
    Wt = np.asarray(W)[:, :D].T
    Ws = np.asarray(W)[:, D:].T
    b = np.asarray(bias)
    pt = T @ Wt + b                                   # (2, N, 2)
    ps = S @ Ws                                       # (ncrops, N, 2)
    ii = np.arange(N)[:, None]
    jj = np.arange(N)[None, :]
    same = outfit_of[ii] == outfit_of[jj]
    negp = same & (is_neg[ii] > 0) & (is_last2[jj] > 0)
    pos = np.zeros(N, np.float64)
    neg = np.zeros(N, np.float64)
    for t in range(2):
        for s in range(ncrops):
            valid = same & (ii != jj)
            if s == t:
                valid = valid & (jj >= ii)
            nm = valid & negp
            pm = valid & ~negp
            proj0 = pt[t][:, None, 0] + ps[s][None, :, 0]   # (N_i, N_j)
            proj1 = pt[t][:, None, 1] + ps[s][None, :, 1]
            pos += np.where(pm, -np.log(proj1), 0.0).sum(axis=1)
            neg += np.where(nm, -np.log(proj0), 0.0).sum(axis=1)
    return pos, neg


if __name__ == "__main__":
    # small, module-consistent shapes
    out_dim = 32                       # feature dim per item (module default 768)
    ncrops = 2                         # student crops
    items_per_outfit = [4, 4]          # two outfits of 4 items -> N = 8
    N = sum(items_per_outfit)

    key = jax.random.PRNGKey(0)
    k1, k2, k3 = jax.random.split(key, 3)
    student_output = jax.random.normal(k1, (ncrops * N, out_dim), jnp.float32) * 0.02
    teacher_output = jax.random.normal(k2, (2 * N, out_dim), jnp.float32) * 0.02

    # lin_proj = nn.Linear(2*out_dim, 2): weight (2, 2*out_dim), bias (2,)
    W = jax.random.normal(k3, (2, 2 * out_dim), jnp.float32) * 0.01
    bias = jnp.array([2.0, 2.0], jnp.float32)   # keeps log() arguments positive
    center = jnp.zeros((1, out_dim), jnp.float32)

    out_loss, new_center = l_softmax_forward(
        student_output, teacher_output, items_per_outfit, W, bias, center, ncrops)
    out_loss = jax.block_until_ready(out_loss)
    new_center = jax.block_until_ready(new_center)

    # correctness check of the Pallas hot path against a dense numpy reference
    structure = sample_structure(items_per_outfit, seed=0)
    outfit_of, is_neg, is_last2 = structure
    pt, ps = project_features(student_output, teacher_output, W, bias, center,
                              ncrops, N, out_dim)
    pos_row, neg_row = pairwise_loss_rows(
        pt, ps,
        jnp.asarray(outfit_of.reshape(1, N)),
        jnp.asarray(outfit_of.reshape(N, 1)),
        jnp.asarray(is_neg.reshape(1, N)),
        jnp.asarray(is_last2.reshape(N, 1)))
    pos_row = jax.block_until_ready(pos_row)
    neg_row = jax.block_until_ready(neg_row)
    pos_ref, neg_ref = _reference_rows(student_output, teacher_output, items_per_outfit,
                                       W, bias, center, ncrops, structure)

    assert np.allclose(np.asarray(pos_row[0]), pos_ref, atol=1e-4)
    assert np.allclose(np.asarray(neg_row[0]), neg_ref, atol=1e-4)
    assert np.isfinite(float(out_loss))

    print("KERNEL_OK")
</pallas_src>

<mosaic_0001>
module attributes {stable_mosaic.version = 11 : i64} {
  func.func @_pairwise_loss_kernel(%arg0: i32, %arg1: i32, %arg2: i32, %arg3: memref<1x2x8xf32, #tpu.memory_space<vmem>>, %arg4: memref<1x8x2xf32, #tpu.memory_space<vmem>>, %arg5: memref<1x8xi32, #tpu.memory_space<vmem>>, %arg6: memref<8x1xi32, #tpu.memory_space<vmem>>, %arg7: memref<1x8xi32, #tpu.memory_space<vmem>>, %arg8: memref<8x1xi32, #tpu.memory_space<vmem>>, %arg9: memref<1x8xf32, #tpu.memory_space<vmem>>, %arg10: memref<1x8xf32, #tpu.memory_space<vmem>>) attributes {dimension_semantics = [#tpu.dimension_semantics<parallel>, #tpu.dimension_semantics<arbitrary>, #tpu.dimension_semantics<arbitrary>], iteration_bounds = array<i64: 1, 2, 2>, scalar_prefetch = 0 : i64, scratch_operands = 0 : i64, tpu.core_type = #tpu.core_type<tc>, window_params = [{transform_indices = @transform_0, window_bounds = array<i64: 1, 2, 8>}, {transform_indices = @transform_1, window_bounds = array<i64: 1, 8, 2>}, {transform_indices = @transform_2, window_bounds = array<i64: 1, 8>}, {pipeline_mode = #tpu.pipeline_mode<synchronous>, transform_indices = @transform_3, window_bounds = array<i64: 8, 1>}, {transform_indices = @transform_4, window_bounds = array<i64: 1, 8>}, {pipeline_mode = #tpu.pipeline_mode<synchronous>, transform_indices = @transform_5, window_bounds = array<i64: 8, 1>}, {transform_indices = @transform_6, window_bounds = array<i64: 1, 8>}, {transform_indices = @transform_7, window_bounds = array<i64: 1, 8>}]} {
    %c0_i32 = arith.constant 0 : i32
    %0 = arith.cmpi eq, %arg1, %c0_i32 : i32
    %c0_i32_0 = arith.constant 0 : i32
    %1 = arith.cmpi eq, %arg2, %c0_i32_0 : i32
    %2 = arith.andi %0, %1 : i1
    %3 = arith.extui %2 : i1 to i32
    %c0_i32_1 = arith.constant 0 : i32
    %4 = arith.cmpi ne, %3, %c0_i32_1 : i32
    scf.if %4 {
      %cst_36 = arith.constant 0.000000e+00 : f32
      %68 = vector.broadcast %cst_36 : f32 to vector<1x8xf32>
      %c0_37 = arith.constant 0 : index
      %c0_38 = arith.constant 0 : index
      %69 = vector.load %arg9[%c0_37, %c0_38] : memref<1x8xf32, #tpu.memory_space<vmem>>, vector<1x8xf32>
      tpu.vector_store %arg9[%c0_37, %c0_38], %68 {strides = array<i32>} : memref<1x8xf32, #tpu.memory_space<vmem>>, vector<1x8xf32>,
      %cst_39 = arith.constant 0.000000e+00 : f32
      %70 = vector.broadcast %cst_39 : f32 to vector<1x8xf32>
      %c0_40 = arith.constant 0 : index
      %c0_41 = arith.constant 0 : index
      %71 = vector.load %arg10[%c0_40, %c0_41] : memref<1x8xf32, #tpu.memory_space<vmem>>, vector<1x8xf32>
      tpu.vector_store %arg10[%c0_40, %c0_41], %70 {strides = array<i32>} : memref<1x8xf32, #tpu.memory_space<vmem>>, vector<1x8xf32>,
    } else {
    }
    %c0 = arith.constant 0 : index
    %c0_2 = arith.constant 0 : index
    %c0_3 = arith.constant 0 : index
    %5 = vector.load %arg3[%c0, %c0_2, %c0_3] : memref<1x2x8xf32, #tpu.memory_space<vmem>>, vector<1x1x8xf32>
    %6 = vector.shape_cast %5 : vector<1x1x8xf32> to vector<1x8xf32>
    %c0_4 = arith.constant 0 : index
    %c1 = arith.constant 1 : index
    %c0_5 = arith.constant 0 : index
    %7 = vector.load %arg3[%c0_4, %c1, %c0_5] : memref<1x2x8xf32, #tpu.memory_space<vmem>>, vector<1x1x8xf32>
    %8 = vector.shape_cast %7 : vector<1x1x8xf32> to vector<1x8xf32>
    %c0_6 = arith.constant 0 : index
    %c0_7 = arith.constant 0 : index
    %c0_8 = arith.constant 0 : index
    %9 = vector.load %arg4[%c0_6, %c0_7, %c0_8] : memref<1x8x2xf32, #tpu.memory_space<vmem>>, vector<1x8x1xf32>
    %10 = vector.shape_cast %9 : vector<1x8x1xf32> to vector<8x1xf32>
    %c0_9 = arith.constant 0 : index
    %c0_10 = arith.constant 0 : index
    %c1_11 = arith.constant 1 : index
    %11 = vector.load %arg4[%c0_9, %c0_10, %c1_11] : memref<1x8x2xf32, #tpu.memory_space<vmem>>, vector<1x8x1xf32>
    %12 = vector.shape_cast %11 : vector<1x8x1xf32> to vector<8x1xf32>
    %13 = vector.broadcast %10 : vector<8x1xf32> to vector<8x8xf32>
    %14 = vector.broadcast %6 : vector<1x8xf32> to vector<8x8xf32>
    %15 = arith.addf %13, %14 : vector<8x8xf32>
    %16 = vector.broadcast %12 : vector<8x1xf32> to vector<8x8xf32>
    %17 = vector.broadcast %8 : vector<1x8xf32> to vector<8x8xf32>
    %18 = arith.addf %16, %17 : vector<8x8xf32>
    %19 = tpu.iota {dimensions = array<i32: 0>} : vector<8x8xi32>
    %20 = tpu.iota {dimensions = array<i32: 1>} : vector<8x8xi32>
    %c8_i32 = arith.constant 8 : i32
    %21 = arith.muli %arg0, %c8_i32 : i32
    %22 = vector.broadcast %21 : i32 to vector<8x8xi32>
    %23 = arith.addi %20, %22 : vector<8x8xi32>
    %c0_12 = arith.constant 0 : index
    %c0_13 = arith.constant 0 : index
    %24 = vector.load %arg6[%c0_12, %c0_13] : memref<8x1xi32, #tpu.memory_space<vmem>>, vector<8x1xi32>
    %c0_14 = arith.constant 0 : index
    %c0_15 = arith.constant 0 : index
    %25 = vector.load %arg5[%c0_14, %c0_15] : memref<1x8xi32, #tpu.memory_space<vmem>>, vector<1x8xi32>
    %26 = vector.broadcast %24 : vector<8x1xi32> to vector<8x8xi32>
    %27 = vector.broadcast %25 : vector<1x8xi32> to vector<8x8xi32>
    %28 = arith.cmpi eq, %26, %27 : vector<8x8xi32>
    %29 = arith.cmpi ne, %23, %19 : vector<8x8xi32>
    %30 = arith.andi %28, %29 : vector<8x8xi1>
    %31 = arith.cmpi ne, %arg1, %arg2 : i32
    %32 = arith.cmpi sge, %19, %23 : vector<8x8xi32>
    %33 = vector.broadcast %31 : i1 to vector<8x8xi1>
    %34 = arith.ori %33, %32 : vector<8x8xi1>
    %35 = arith.andi %30, %34 : vector<8x8xi1>
    %c0_16 = arith.constant 0 : index
    %c0_17 = arith.constant 0 : index
    %36 = vector.load %arg7[%c0_16, %c0_17] : memref<1x8xi32, #tpu.memory_space<vmem>>, vector<1x8xi32>
    %c0_i32_18 = arith.constant 0 : i32
    %37 = vector.broadcast %c0_i32_18 : i32 to vector<1x8xi32>
    %38 = arith.cmpi ne, %36, %37 : vector<1x8xi32>
    %c0_19 = arith.constant 0 : index
    %c0_20 = arith.constant 0 : index
    %39 = vector.load %arg8[%c0_19, %c0_20] : memref<8x1xi32, #tpu.memory_space<vmem>>, vector<8x1xi32>
    %c0_i32_21 = arith.constant 0 : i32
    %40 = vector.broadcast %c0_i32_21 : i32 to vector<8x1xi32>
    %41 = arith.cmpi ne, %39, %40 : vector<8x1xi32>
    %42 = vector.broadcast %38 : vector<1x8xi1> to vector<8x8xi1>
    %43 = vector.broadcast %41 : vector<8x1xi1> to vector<8x8xi1>
    %44 = arith.andi %42, %43 : vector<8x8xi1>
    %45 = arith.andi %35, %44 : vector<8x8xi1>
    %cst = arith.constant dense<true> : vector<8x8xi1>
    %46 = arith.xori %45, %cst : vector<8x8xi1>
    %47 = arith.andi %35, %46 : vector<8x8xi1>
    %48 = arith.select %45, %15, %18 : vector<8x8xi1>, vector<8x8xf32>
    %cst_22 = arith.constant 1.000000e+00 : f32
    %49 = vector.broadcast %cst_22 : f32 to vector<8x8xf32>
    %50 = arith.select %35, %48, %49 : vector<8x8xi1>, vector<8x8xf32>
    %51 = math.log %50 : vector<8x8xf32>
    %cst_23 = arith.constant 0.000000e+00 : f32
    %52 = vector.broadcast %cst_23 : f32 to vector<8x8xf32>
    %53 = arith.subf %52, %51 : vector<8x8xf32>
    %c0_24 = arith.constant 0 : index
    %c0_25 = arith.constant 0 : index
    %54 = vector.load %arg9[%c0_24, %c0_25] : memref<1x8xf32, #tpu.memory_space<vmem>>, vector<1x8xf32>
    %cst_26 = arith.constant 0.000000e+00 : f32
    %55 = vector.broadcast %cst_26 : f32 to vector<8x8xf32>
    %56 = arith.select %47, %53, %55 : vector<8x8xi1>, vector<8x8xf32>
    %cst_27 = arith.constant dense<0.000000e+00> : vector<8xf32>
    %57 = vector.multi_reduction <add>, %56, %cst_27 [0] : vector<8x8xf32> to vector<8xf32>
    %58 = vector.shape_cast %57 : vector<8xf32> to vector<1x8xf32>
    %59 = arith.addf %54, %58 : vector<1x8xf32>
    %c0_28 = arith.constant 0 : index
    %c0_29 = arith.constant 0 : index
    %60 = vector.load %arg9[%c0_28, %c0_29] : memref<1x8xf32, #tpu.memory_space<vmem>>, vector<1x8xf32>
    tpu.vector_store %arg9[%c0_28, %c0_29], %59 {strides = array<i32>} : memref<1x8xf32, #tpu.memory_space<vmem>>, vector<1x8xf32>,
    %c0_30 = arith.constant 0 : index
    %c0_31 = arith.constant 0 : index
    %61 = vector.load %arg10[%c0_30, %c0_31] : memref<1x8xf32, #tpu.memory_space<vmem>>, vector<1x8xf32>
    %cst_32 = arith.constant 0.000000e+00 : f32
    %62 = vector.broadcast %cst_32 : f32 to vector<8x8xf32>
    %63 = arith.select %45, %53, %62 : vector<8x8xi1>, vector<8x8xf32>
    %cst_33 = arith.constant dense<0.000000e+00> : vector<8xf32>
    %64 = vector.multi_reduction <add>, %63, %cst_33 [0] : vector<8x8xf32> to vector<8xf32>
    %65 = vector.shape_cast %64 : vector<8xf32> to vector<1x8xf32>
    %66 = arith.addf %61, %65 : vector<1x8xf32>
    %c0_34 = arith.constant 0 : index
    %c0_35 = arith.constant 0 : index
    %67 = vector.load %arg10[%c0_34, %c0_35] : memref<1x8xf32, #tpu.memory_space<vmem>>, vector<1x8xf32>
    tpu.vector_store %arg10[%c0_34, %c0_35], %66 {strides = array<i32>} : memref<1x8xf32, #tpu.memory_space<vmem>>, vector<1x8xf32>,
    return
  }
  func.func @transform_0(%arg0: i32, %arg1: i32, %arg2: i32) -> (i32, i32, i32) {
    %c0_i32 = arith.constant 0 : i32
    %c0_i32_0 = arith.constant 0 : i32
    return %arg1, %c0_i32, %arg0 : i32, i32, i32
  }
  func.func @transform_1(%arg0: i32, %arg1: i32, %arg2: i32) -> (i32, i32, i32) {
    %c0_i32 = arith.constant 0 : i32
    %c0_i32_0 = arith.constant 0 : i32
    %c0_i32_1 = arith.constant 0 : i32
    return %arg2, %c0_i32, %c0_i32_0 : i32, i32, i32
  }
  func.func @transform_2(%arg0: i32, %arg1: i32, %arg2: i32) -> (i32, i32) {
    %c0_i32 = arith.constant 0 : i32
    %c0_i32_0 = arith.constant 0 : i32
    return %c0_i32, %arg0 : i32, i32
  }
  func.func @transform_3(%arg0: i32, %arg1: i32, %arg2: i32) -> (i32, i32) {
    %c0_i32 = arith.constant 0 : i32
    %c0_i32_0 = arith.constant 0 : i32
    %c0_i32_1 = arith.constant 0 : i32
    return %c0_i32, %c0_i32_0 : i32, i32
  }
  func.func @transform_4(%arg0: i32, %arg1: i32, %arg2: i32) -> (i32, i32) {
    %c0_i32 = arith.constant 0 : i32
    %c0_i32_0 = arith.constant 0 : i32
    return %c0_i32, %arg0 : i32, i32
  }
  func.func @transform_5(%arg0: i32, %arg1: i32, %arg2: i32) -> (i32, i32) {
    %c0_i32 = arith.constant 0 : i32
    %c0_i32_0 = arith.constant 0 : i32
    %c0_i32_1 = arith.constant 0 : i32
    return %c0_i32, %c0_i32_0 : i32, i32
  }
  func.func @transform_6(%arg0: i32, %arg1: i32, %arg2: i32) -> (i32, i32) {
    %c0_i32 = arith.constant 0 : i32
    %c0_i32_0 = arith.constant 0 : i32
    return %c0_i32, %arg0 : i32, i32
  }
  func.func @transform_7(%arg0: i32, %arg1: i32, %arg2: i32) -> (i32, i32) {
    %c0_i32 = arith.constant 0 : i32
    %c0_i32_0 = arith.constant 0 : i32
    return %c0_i32, %arg0 : i32, i32
  }
}

</mosaic_0001>

<llo_original>
// kernel: tpu_custom_call.1
$region0: #{tpu_custom_call.1}
  #allocation0 [shape = 'u32[]', space=smem, size = 0x4, offset = 0x4, fixed_abs, tag = 'smem constant byte address 0x4 - core index']
  #allocation1 [shape = 'u32[72,128]{1,0:T(1,128)}', space=vmem, size = 0x9000, scoped, tag = 'internal scratch']
  %s0 = inlined_call_operand.vmem [shape: f32[2,2,8], index: 0, kind: input, shape index: {}]
  %s1 = inlined_call_operand.vmem [shape: f32[2,8,2], index: 1, kind: input, shape index: {}]
  %s2 = inlined_call_operand.vmem [shape: s32[1,8], index: 2, kind: input, shape index: {}]
  %s3 = inlined_call_operand.vmem [shape: s32[8,1], index: 3, kind: input, shape index: {}]
  %s4 = inlined_call_operand.vmem [shape: s32[1,8], index: 4, kind: input, shape index: {}]
  %s5 = inlined_call_operand.vmem [shape: s32[8,1], index: 5, kind: input, shape index: {}]
  %s6 = inlined_call_operand.hbm [shape: f32[1,8], index: 6, kind: output, shape index: {0}]
  %s7 = inlined_call_operand.hbm [shape: f32[1,8], index: 7, kind: output, shape index: {1}]
  %8 = xla_tuple %s6, %s7
  %s9 = sld [smem:[#allocation0]]
  $region69: #{tpu_custom_call.1} parent=0
    _
  %s11 = ssub.s32 1, %s9
  %s12 = scalar_select 0, %s11, %s9
  $region1: #{tpu_custom_call.1} parent=0
    #allocation2 [shape = 'u8[512]{0}', space=vmem, size = 0x400, scoped, tag = 'output window, operand 0, single buffered']
    #allocation3 [shape = 's32[2]{0}', space=sflag, size = 0x8, scoped, tag = 'scoped memory for tpu_custom_call.1']
    #allocation4 [shape = 'u8[512]{0}', space=vmem, size = 0x400, scoped, tag = 'output window, operand 1, single buffered']
    #allocation5 [shape = 's32[1]{0}', space=sflag, size = 0x4, scoped, tag = 'scoped memory for tpu_custom_call.1']
    %13 = vsyncpa [#allocation3], 0
    %14 = vsyncpa [#allocation5], 0
    loop: start=0, step=1, limit=6
    $region2: #{tpu_custom_call.1} parent=1 // loop_pre_header
      _
    $region3: #{tpu_custom_call.1} parent=1 // loop_header
      %s16 = sphi 0, %s20
      %p17 = scmp.ge.s32.totalorder %s16, 6
      %s23 = sphi 0, %s42
      %s24 = sphi 0, %s38
      %s25 = sphi 0, %s34
      %s26 = sphi 0, %s23
      %s27 = sphi 0, %s24
      %s28 = sphi 0, %s25
      %s29 = sphi 0, %s26
      %s30 = sphi 0, %s27
      %s31 = sphi 0, %s28
      %s47 = sphi 0, %s49
      %s50 = sphi 0, %s47
      %s51 = sphi 0, %s50
      %s67 = sphi 0, %s51
      %s73 = sphi 0, %s75
      %s76 = sphi 0, %s73
      %s77 = sphi 0, %s76
      %s93 = sphi 0, %s77
      %s99 = sphi 0, %s101
      %s102 = sphi 0, %s99
      %s103 = sphi 0, %s102
      %s119 = sphi 0, %s103
      %s123 = sphi 0, %s123
      %s125 = sphi 0, %s123
      %s126 = sphi 0, %s125
      %s140 = sphi 0, %s126
      %s146 = sphi 0, %s148
      %s149 = sphi 0, %s146
      %s150 = sphi 0, %s149
      %s166 = sphi 0, %s150
      %s170 = sphi 0, %s170
      %s172 = sphi 0, %s170
      %s173 = sphi 0, %s172
      %s187 = sphi 0, %s173
      %s193 = sphi 0, %s195
      %s196 = sphi 0, %s193
      %s197 = sphi 0, %s196
      %s213 = sphi 0, %s197
      %s219 = sphi 0, %s221
      %s222 = sphi 0, %s219
      %s223 = sphi 0, %s222
      %s239 = sphi 0, %s223
    $region4: #{tpu_custom_call.1} parent=1 // loop_header_branch
      %19 = sbr.rel (%p17) target = $region8
    $region5: #{tpu_custom_call.1} parent=1 // loop_body
      %s21 = ssub.s32 %s16, 1
      %s22 = ssub.s32 %s16, 2
      %s32 = sadd.s32 1, %s25
      %p33 = scmp.ge.s32.totalorder %s32, 2
      %s34 = scalar_select %p33, 0, %s32
      %s35 = sadd.s32 1, %s24
      %s36 = scalar_select %p33, %s35, %s24
      %p37 = scmp.ge.s32.totalorder %s36, 2
      %s38 = scalar_select %p37, 0, %s36
      %s39 = sadd.s32 1, %s23
      %s40 = scalar_select %p37, %s39, %s23
      %p41 = scmp.ge.s32.totalorder %s40, 1
      %s42 = scalar_select %p41, 0, %s40
      %s43 = ssub.s32 %s24, %s38
      %s44 = ssub.s32 %s23, %s42
      %s45 = sor.u32 %s43, %s44
      %p46 = scmp.eq.s32.totalorder %s45, 0
      %s48 = sadd.s32 %s47, 1
      %s49 = scalar_select %p46, %s47, %s48
      %p52 = pneg %p46
      %p53 = scmp.eq.s32.totalorder %s16, 3
      %p54 = por %p52, %p53
      %p55 = scmp.ne.s32.totalorder %s47, %s50
      %p56 = scmp.eq.s32.totalorder %s16, 0
      %p57 = por %p55, %p56
      %p58 = scmp.ne.s32.totalorder %s47, %s50
      %p59 = scmp.eq.s32.totalorder %s21, 3
      %p60 = por %p58, %p59
      %p61 = scmp.ne.s32.totalorder %s50, %s51
      %p62 = scmp.eq.s32.totalorder %s21, 0
      %p63 = por %p61, %p62
      %p64 = scmp.ne.s32.totalorder %s50, %s51
      %p65 = scmp.eq.s32.totalorder %s22, 3
      %p66 = por %p64, %p65
      %p68 = scmp.ne.s32.totalorder %s51, %s67
      %p69 = scmp.eq.s32.totalorder %s22, 0
      %p70 = por %p68, %p69
      %s71 = ssub.s32 %s25, %s34
      %p72 = scmp.eq.s32.totalorder %s71, 0
      %s74 = sadd.s32 %s73, 1
      %s75 = scalar_select %p72, %s73, %s74
      %p78 = pneg %p72
      %p79 = scmp.eq.s32.totalorder %s16, 3
      %p80 = por %p78, %p79
      %p81 = scmp.ne.s32.totalorder %s73, %s76
      %p82 = scmp.eq.s32.totalorder %s16, 0
      %p83 = por %p81, %p82
      %p84 = scmp.ne.s32.totalorder %s73, %s76
      %p85 = scmp.eq.s32.totalorder %s21, 3
      %p86 = por %p84, %p85
      %p87 = scmp.ne.s32.totalorder %s76, %s77
      %p88 = scmp.eq.s32.totalorder %s21, 0
      %p89 = por %p87, %p88
      %p90 = scmp.ne.s32.totalorder %s76, %s77
      %p91 = scmp.eq.s32.totalorder %s22, 3
      %p92 = por %p90, %p91
      %p94 = scmp.ne.s32.totalorder %s77, %s93
      %p95 = scmp.eq.s32.totalorder %s22, 0
      %p96 = por %p94, %p95
      %s97 = ssub.s32 %s23, %s42
      %p98 = scmp.eq.s32.totalorder %s97, 0
      %s100 = sadd.s32 %s99, 1
      %s101 = scalar_select %p98, %s99, %s100
      %p104 = pneg %p98
      %p105 = scmp.eq.s32.totalorder %s16, 3
      %p106 = por %p104, %p105
      %p107 = scmp.ne.s32.totalorder %s99, %s102
      %p108 = scmp.eq.s32.totalorder %s16, 0
      %p109 = por %p107, %p108
      %p110 = scmp.ne.s32.totalorder %s99, %s102
      %p111 = scmp.eq.s32.totalorder %s21, 3
      %p112 = por %p110, %p111
      %p113 = scmp.ne.s32.totalorder %s102, %s103
      %p114 = scmp.eq.s32.totalorder %s21, 0
      %p115 = por %p113, %p114
      %p116 = scmp.ne.s32.totalorder %s102, %s103
      %p117 = scmp.eq.s32.totalorder %s22, 3
      %p118 = por %p116, %p117
      %p120 = scmp.ne.s32.totalorder %s103, %s119
      %p121 = scmp.eq.s32.totalorder %s22, 0
      %p122 = por %p120, %p121
      %s124 = sadd.s32 %s123, 1
      %p127 = scmp.eq.s32.totalorder %s16, 3
      %p128 = scmp.ne.s32.totalorder %s123, %s125
      %p129 = scmp.eq.s32.totalorder %s16, 0
      %p130 = por %p128, %p129
      %p131 = scmp.ne.s32.totalorder %s123, %s125
      %p132 = scmp.eq.s32.totalorder %s21, 3
      %p133 = por %p131, %p132
      %p134 = scmp.ne.s32.totalorder %s125, %s126
      %p135 = scmp.eq.s32.totalorder %s21, 0
      %p136 = por %p134, %p135
      %p137 = scmp.ne.s32.totalorder %s125, %s126
      %p138 = scmp.eq.s32.totalorder %s22, 3
      %p139 = por %p137, %p138
      %p141 = scmp.ne.s32.totalorder %s126, %s140
      %p142 = scmp.eq.s32.totalorder %s22, 0
      %p143 = por %p141, %p142
      %s144 = ssub.s32 %s23, %s42
      %p145 = scmp.eq.s32.totalorder %s144, 0
      %s147 = sadd.s32 %s146, 1
      %s148 = scalar_select %p145, %s146, %s147
      %p151 = pneg %p145
      %p152 = scmp.eq.s32.totalorder %s16, 3
      %p153 = por %p151, %p152
      %p154 = scmp.ne.s32.totalorder %s146, %s149
      %p155 = scmp.eq.s32.totalorder %s16, 0
      %p156 = por %p154, %p155
      %p157 = scmp.ne.s32.totalorder %s146, %s149
      %p158 = scmp.eq.s32.totalorder %s21, 3
      %p159 = por %p157, %p158
      %p160 = scmp.ne.s32.totalorder %s149, %s150
      %p161 = scmp.eq.s32.totalorder %s21, 0
      %p162 = por %p160, %p161
      %p163 = scmp.ne.s32.totalorder %s149, %s150
      %p164 = scmp.eq.s32.totalorder %s22, 3
      %p165 = por %p163, %p164
      %p167 = scmp.ne.s32.totalorder %s150, %s166
      %p168 = scmp.eq.s32.totalorder %s22, 0
      %p169 = por %p167, %p168
      %s171 = sadd.s32 %s170, 1
      %p174 = scmp.eq.s32.totalorder %s16, 3
      %p175 = scmp.ne.s32.totalorder %s170, %s172
      %p176 = scmp.eq.s32.totalorder %s16, 0
      %p177 = por %p175, %p176
      %p178 = scmp.ne.s32.totalorder %s170, %s172
      %p179 = scmp.eq.s32.totalorder %s21, 3
      %p180 = por %p178, %p179
      %p181 = scmp.ne.s32.totalorder %s172, %s173
      %p182 = scmp.eq.s32.totalorder %s21, 0
      %p183 = por %p181, %p182
      %p184 = scmp.ne.s32.totalorder %s172, %s173
      %p185 = scmp.eq.s32.totalorder %s22, 3
      %p186 = por %p184, %p185
      %p188 = scmp.ne.s32.totalorder %s173, %s187
      %p189 = scmp.eq.s32.totalorder %s22, 0
      %p190 = por %p188, %p189
      %s191 = ssub.s32 %s23, %s42
      %p192 = scmp.eq.s32.totalorder %s191, 0
      %s194 = sadd.s32 %s193, 1
      %s195 = scalar_select %p192, %s193, %s194
      %p198 = pneg %p192
      %p199 = scmp.eq.s32.totalorder %s16, 3
      %p200 = por %p198, %p199
      %p201 = scmp.ne.s32.totalorder %s193, %s196
      %p202 = scmp.eq.s32.totalorder %s16, 0
      %p203 = por %p201, %p202
      %p204 = scmp.ne.s32.totalorder %s193, %s196
      %p205 = scmp.eq.s32.totalorder %s21, 3
      %p206 = por %p204, %p205
      %p207 = scmp.ne.s32.totalorder %s196, %s197
      %p208 = scmp.eq.s32.totalorder %s21, 0
      %p209 = por %p207, %p208
      %p210 = scmp.ne.s32.totalorder %s196, %s197
      %p211 = scmp.eq.s32.totalorder %s22, 3
      %p212 = por %p210, %p211
      %p214 = scmp.ne.s32.totalorder %s197, %s213
      %p215 = scmp.eq.s32.totalorder %s22, 0
      %p216 = por %p214, %p215
      %s217 = ssub.s32 %s23, %s42
      %p218 = scmp.eq.s32.totalorder %s217, 0
      %s220 = sadd.s32 %s219, 1
      %s221 = scalar_select %p218, %s219, %s220
      %p224 = pneg %p218
      %p225 = scmp.eq.s32.totalorder %s16, 3
      %p226 = por %p224, %p225
      %p227 = scmp.ne.s32.totalorder %s219, %s222
      %p228 = scmp.eq.s32.totalorder %s16, 0
      %p229 = por %p227, %p228
      %p230 = scmp.ne.s32.totalorder %s219, %s222
      %p231 = scmp.eq.s32.totalorder %s21, 3
      %p232 = por %p230, %p231
      %p233 = scmp.ne.s32.totalorder %s222, %s223
      %p234 = scmp.eq.s32.totalorder %s21, 0
      %p235 = por %p233, %p234
      %p236 = scmp.ne.s32.totalorder %s222, %s223
      %p237 = scmp.eq.s32.totalorder %s22, 3
      %p238 = por %p236, %p237
      %p240 = scmp.ne.s32.totalorder %s223, %s239
      %p241 = scmp.eq.s32.totalorder %s22, 0
      %p242 = por %p240, %p241
      %p243 = scmp.le.s32.totalorder 1, %s16
      %p244 = scmp.lt.s32.totalorder %s16, 5
      %p245 = pnand %p243, %p244
      %p246 = pneg %p245
      // Predicated region
      $region9: #{tpu_custom_call.1} parent=5 // pred_check
        _
      $region10: #{tpu_custom_call.1} parent=5 // pred_check_branch
        %248 = sbr.rel (%p245) target = $region12
      $region11: #{tpu_custom_call.1} parent=5 // pred_region
        %s249 = ssub.s32 %s16, 1
        // Predicated region
        $region13: #{tpu_custom_call.1} parent=11 // pred_check
          %p250 = pneg %p115
        $region14: #{tpu_custom_call.1} parent=11 // pred_check_branch
          %252 = sbr.rel (%p250) target = $region16
        $region15: #{tpu_custom_call.1} parent=11 // pred_region
          %p253 = scmp.lt.s32.totalorder %s26, 0
          %s254 = scalar_select %p253, %s26, 0
          %s255 = scalar_lea.vmem %s2, %s254
        $region16: #{tpu_custom_call.1} parent=11 // pred_fallthru
          _
        // Predicated region
        $region17: #{tpu_custom_call.1} parent=11 // pred_check
          %p256 = pneg %p136
        $region18: #{tpu_custom_call.1} parent=11 // pred_check_branch
          %258 = sbr.rel (%p256) target = $region20
        $region19: #{tpu_custom_call.1} parent=11 // pred_region
          _
        $region20: #{tpu_custom_call.1} parent=11 // pred_fallthru
          _
        // Predicated region
        $region21: #{tpu_custom_call.1} parent=11 // pred_check
          %p259 = pneg %p162
        $region22: #{tpu_custom_call.1} parent=11 // pred_check_branch
          %261 = sbr.rel (%p259) target = $region24
        $region23: #{tpu_custom_call.1} parent=11 // pred_region
          %p262 = scmp.lt.s32.totalorder %s26, 0
          %s263 = scalar_select %p262, %s26, 0
          %s264 = scalar_lea.vmem %s4, %s263
        $region24: #{tpu_custom_call.1} parent=11 // pred_fallthru
          _
        // Predicated region
        $region25: #{tpu_custom_call.1} parent=11 // pred_check
          %p265 = pneg %p183
        $region26: #{tpu_custom_call.1} parent=11 // pred_check_branch
          %267 = sbr.rel (%p265) target = $region28
        $region27: #{tpu_custom_call.1} parent=11 // pred_region
          _
        $region28: #{tpu_custom_call.1} parent=11 // pred_fallthru
          _
      $region12: #{tpu_custom_call.1} parent=5 // pred_fallthru
        _
      %p268 = scmp.lt.s32.totalorder %s16, 4
      // Predicated region
      $region29: #{tpu_custom_call.1} parent=5 // pred_check
        %p269 = pneg %p268
      $region30: #{tpu_custom_call.1} parent=5 // pred_check_branch
        %271 = sbr.rel (%p269) target = $region32
      $region31: #{tpu_custom_call.1} parent=5 // pred_region
        // Predicated region
        $region33: #{tpu_custom_call.1} parent=31 // pred_check
          %p272 = pneg %p57
        $region34: #{tpu_custom_call.1} parent=31 // pred_check_branch
          %274 = sbr.rel (%p272) target = $region36
        $region35: #{tpu_custom_call.1} parent=31 // pred_region
          %p275 = scmp.lt.s32.totalorder %s24, 1
          %s276 = scalar_select %p275, %s24, 1
          %p277 = scmp.lt.s32.totalorder %s23, 0
          %s278 = scalar_select %p277, %s23, 0
          %s279 = sadd.s32 %s278, %s276
          %s280 = smul.addr %s279, 2
          %s281 = scalar_lea.vmem %s0, %s280
        $region36: #{tpu_custom_call.1} parent=31 // pred_fallthru
          _
        // Predicated region
        $region37: #{tpu_custom_call.1} parent=31 // pred_check
          %p282 = pneg %p83
        $region38: #{tpu_custom_call.1} parent=31 // pred_check_branch
          %284 = sbr.rel (%p282) target = $region40
        $region39: #{tpu_custom_call.1} parent=31 // pred_region
          %p285 = scmp.lt.s32.totalorder %s25, 1
          %s286 = scalar_select %p285, %s25, 1
          %s287 = smul.addr %s286, 8
          %s288 = scalar_lea.vmem %s1, %s287
        $region40: #{tpu_custom_call.1} parent=31 // pred_fallthru
          _
      $region32: #{tpu_custom_call.1} parent=5 // pred_fallthru
        _
      %p289 = scmp.le.s32.totalorder 1, %s16
      %p290 = scmp.lt.s32.totalorder %s16, 5
      %p291 = pnand %p289, %p290
      %p292 = pneg %p291
      // Predicated region
      $region41: #{tpu_custom_call.1} parent=5 // pred_check
        _
      $region42: #{tpu_custom_call.1} parent=5 // pred_check_branch
        %294 = sbr.rel (%p291) target = $region44
      $region43: #{tpu_custom_call.1} parent=5 // pred_region
        %s295 = ssub.s32 %s16, 1
        %p296 = scmp.lt.s32.totalorder %s27, 1
        %s297 = scalar_select %p296, %s27, 1
        %p298 = scmp.lt.s32.totalorder %s26, 0
        %s299 = scalar_select %p298, %s26, 0
        %s300 = sadd.s32 %s299, %s297
        %s301 = smul.addr %s300, 2
        %s302 = scalar_lea.vmem %s0, %s301
        %p303 = pneg %p63
        %p304 = pneg %p60
        %p305 = scmp.lt.s32.totalorder %s28, 1
        %s306 = scalar_select %p305, %s28, 1
        %s307 = smul.addr %s306, 8
        %s308 = scalar_lea.vmem %s1, %s307
        %p309 = pneg %p89
        %p310 = pneg %p86
        %p311 = scmp.lt.s32.totalorder %s26, 0
        %s312 = scalar_select %p311, %s26, 0
        %s313 = scalar_lea.vmem %s2, %s312
        %p314 = pneg %p115
        %p315 = pneg %p112
        %p316 = pneg %p136
        %p317 = pneg %p133
        %p318 = scmp.lt.s32.totalorder %s26, 0
        %s319 = scalar_select %p318, %s26, 0
        %s320 = scalar_lea.vmem %s4, %s319
        %p321 = pneg %p162
        %p322 = pneg %p159
        %p323 = pneg %p183
        %p324 = pneg %p180
        %p325 = pneg %p209
        %p326 = pneg %p206
        %p327 = pneg %p235
        %p328 = pneg %p232
        %p329 = scmp.lt.s32.totalorder %s27, 1
        %s330 = scalar_select %p329, %s27, 1
        %p331 = scmp.lt.s32.totalorder %s26, 0
        %s332 = scalar_select %p331, %s26, 0
        %s333 = sadd.s32 %s332, %s330
        %s334 = smul.addr %s333, 2
        %s335 = scalar_lea.vmem %s0, %s334
        %p336 = scmp.lt.s32.totalorder %s28, 1
        %s337 = scalar_select %p336, %s28, 1
        %s338 = smul.addr %s337, 8
        %s339 = scalar_lea.vmem %s1, %s338
        %p340 = scmp.lt.s32.totalorder %s26, 0
        %s341 = scalar_select %p340, %s26, 0
        %s342 = scalar_lea.vmem %s2, %s341
        %p343 = scmp.lt.s32.totalorder %s26, 0
        %s344 = scalar_select %p343, %s26, 0
        %s345 = scalar_lea.vmem %s4, %s344
        %p346 = scmp.eq.s32.totalorder %s27, 0
        %p347 = scmp.eq.s32.totalorder %s28, 0
        %p348 = pnand %p346, %p347
        %p349 = pneg %p348
        // Predicated region
        $region45: #{tpu_custom_call.1} parent=43 // pred_check
          _
        $region46: #{tpu_custom_call.1} parent=43 // pred_check_branch
          %351 = sbr.rel (%p348) target = $region48
        $region47: #{tpu_custom_call.1} parent=43 // pred_region
          %vm352 = vcmask 57344
          %353 = vst.msk [vmem:[#allocation2] sm:$0x1] %vm352, 0.0
          %354 = vst.msk [vmem:[#allocation4] sm:$0x1] %vm352, 0.0
        $region48: #{tpu_custom_call.1} parent=43 // pred_fallthru
          _
        %v355 = vld [vmem:[%s335] sm:$0x1]
        %v356 = vld [vmem:[%s335 + $0x1] sm:$0x1]
        %v357 = vld [vmem:[%s339] sm:$0xff]
        %359 = vset.pattern.permute.xlu0 0
        %360 = vperm.xlu0 %359, %v357
        %v361 = vpop.permute.xlu0 %360
        %v363 = vperm.slane %v355, 0
        %v364 = vadd.f32 %v361, %v363
        %365 = vset.pattern.permute.xlu0 1
        %366 = vperm.xlu0 %365, %v357
        %v367 = vpop.permute.xlu0 %366
        %v369 = vperm.slane %v356, 0
        %v370 = vadd.f32 %v367, %v369
        %v371 = vlaneseq
        %v372 = vshrl.u32 %v371, 7
        %v373 = vlaneseq
        %v374 = vand.u32 %v373, 127
        %s375 = smul.u32 %s26, 8
        %v376 = vstv %s375
        %v377 = vadd.s32 %v374, %v376
        %v378 = vld [vmem:[%s3] sm:$0xff]
        %v379 = vld [vmem:[%s342] sm:$0x1]
        %380 = vset.pattern.permute.xlu0 0
        %381 = vperm.xlu0 %380, %v378
        %v382 = vpop.permute.xlu0 %381
        %v383 = vperm.slane %v379, 0
        %vm384 = vcmp.eq.s32.totalorder %v382, %v383
        %vm385 = vcmp.ne.s32.totalorder %v377, %v372
        %vm386 = vmand %vm384, %vm385
        %p387 = scmp.ne.s32.totalorder %s27, %s28
        %vm388 = vcmp.ge.s32.totalorder %v372, %v377
        %s389 = scalar_select %p387, 1, 0
        %v390 = vstv %s389
        %vm391 = vcmp.eq.s32.totalorder %v390, 1
        %vm392 = vmor %vm391, %vm388
        %vm393 = vmand %vm386, %vm392
        %v394 = vld [vmem:[%s345] sm:$0x1]
        %vm395 = vcmp.ne.s32.totalorder %v394, 0
        %v396 = vld [vmem:[%s5] sm:$0xff]
        %vm397 = vcmp.ne.s32.totalorder %v396, 0
        %v398 = vsel %vm395, 1, 0
        %v399 = vperm.slane %v398, 0
        %vm400 = vcmp.eq.s32.totalorder %v399, 1
        %v401 = vsel %vm397, 1, 0
        %402 = vset.pattern.permute.xlu0 0
        %403 = vperm.xlu0 %402, %v401
        %v404 = vpop.permute.xlu0 %403
        %vm405 = vcmp.eq.s32.totalorder %v404, 1
        %vm406 = vmand %vm400, %vm405
        %vm407 = vmand %vm393, %vm406
        %vm408 = vmxor %vm407, 1
        %vm409 = vmand %vm393, %vm408
        %v410 = vsel %vm407, %v364, %v370
        %v411 = vsel %vm393, %v410, 1.0
        %v412 = vlog2.pop %v411
        %v413 = vmul.f32 %v412, 0.6931472
        %v414 = vsub.f32 0.0, %v413
        %v415 = vld [vmem:[#allocation2] sm:$0x1]
        %v416 = vsel %vm409, %v414, 0.0
        %vm417 = vcmask 64512
        %v418 = vsel %vm417, %v416, 0.0
        %v419 = vrot.slane %v418, 4
        %v420 = vadd.f32 %v418, %v419
        %v421 = vrot.slane %v420, 2
        %v422 = vadd.f32 %v420, %v421
        %v423 = vrot.slane %v422, 1
        %v424 = vadd.f32 %v422, %v423
        %v425 = vadd.f32 %v415, %v424
        %vm426 = vcmask 57344
        %427 = vst.msk [vmem:[#allocation2] sm:$0x1] %vm426, %v425
        %v428 = vld [vmem:[#allocation4] sm:$0x1]
        %v429 = vsel %vm407, %v414, 0.0
        %v430 = vsel %vm417, %v429, 0.0
        %v431 = vrot.slane %v430, 4
        %v432 = vadd.f32 %v430, %v431
        %v433 = vrot.slane %v432, 2
        %v434 = vadd.f32 %v432, %v433
        %v435 = vrot.slane %v434, 1
        %v436 = vadd.f32 %v434, %v435
        %v437 = vadd.f32 %v428, %v436
        %438 = vst.msk [vmem:[#allocation4] sm:$0x1] %vm426, %v437
        // Predicated region
        $region49: #{tpu_custom_call.1} parent=43 // pred_check
          %p439 = pneg %p206
        $region50: #{tpu_custom_call.1} parent=43 // pred_check_branch
          %441 = sbr.rel (%p439) target = $region52
        $region51: #{tpu_custom_call.1} parent=43 // pred_region
          %443 = vsyncadd [#allocation3], 0
          %s444 = scalar_lea.hbm %s6, %s26
          %s446 = sshll.u32 [#allocation2], 4
          %s447 = int_to_ptr.vmem [resolvable:$true] %s446
          %s448 = sshll.u32 %s444, 4
          %s449 = int_to_ptr.hbm [resolvable:$true] %s448
          %451 = dma.vmem_to_hbm [thread:$0]  %s447, 16, %s449, [#allocation3]
        $region52: #{tpu_custom_call.1} parent=43 // pred_fallthru
          _
        // Predicated region
        $region53: #{tpu_custom_call.1} parent=43 // pred_check
          %p452 = pneg %p232
        $region54: #{tpu_custom_call.1} parent=43 // pred_check_branch
          %454 = sbr.rel (%p452) target = $region56
        $region55: #{tpu_custom_call.1} parent=43 // pred_region
          %456 = vsyncadd [#allocation5], 0
          %s457 = scalar_lea.hbm %s7, %s26
          %s459 = sshll.u32 [#allocation4], 4
          %s460 = int_to_ptr.vmem [resolvable:$true] %s459
          %s461 = sshll.u32 %s457, 4
          %s462 = int_to_ptr.hbm [resolvable:$true] %s461
          %464 = dma.vmem_to_hbm [thread:$0]  %s460, 16, %s462, [#allocation5]
        $region56: #{tpu_custom_call.1} parent=43 // pred_fallthru
          _
        // Predicated region
        $region57: #{tpu_custom_call.1} parent=43 // pred_check
          %p465 = pneg %p206
        $region58: #{tpu_custom_call.1} parent=43 // pred_check_branch
          %467 = sbr.rel (%p465) target = $region60
        $region59: #{tpu_custom_call.1} parent=43 // pred_region
          %469 = dma.done [#allocation3], 16
        $region60: #{tpu_custom_call.1} parent=43 // pred_fallthru
          _
        // Predicated region
        $region61: #{tpu_custom_call.1} parent=43 // pred_check
          %p470 = pneg %p232
        $region62: #{tpu_custom_call.1} parent=43 // pred_check_branch
          %472 = sbr.rel (%p470) target = $region64
        $region63: #{tpu_custom_call.1} parent=43 // pred_region
          %474 = dma.done [#allocation5], 16
        $region64: #{tpu_custom_call.1} parent=43 // pred_fallthru
          _
      $region44: #{tpu_custom_call.1} parent=5 // pred_fallthru
        _
      %p475 = scmp.le.s32.totalorder 2, %s16
      // Predicated region
      $region65: #{tpu_custom_call.1} parent=5 // pred_check
        %p476 = pneg %p475
      $region66: #{tpu_custom_call.1} parent=5 // pred_check_branch
        %478 = sbr.rel (%p476) target = $region68
      $region67: #{tpu_custom_call.1} parent=5 // pred_region
        %s479 = ssub.s32 %s16, 2
      $region68: #{tpu_custom_call.1} parent=5 // pred_fallthru
        _
    $region6: #{tpu_custom_call.1} parent=1 // loop_footer
      %s20 = sadd.s32 1, %s16
    $region7: #{tpu_custom_call.1} parent=1 // loop_footer_branch
      %15 = sbr.rel target = $region3
    $region8: #{tpu_custom_call.1} parent=1 // loop_exit
      _
    %480 = vsyncpa [#allocation3], 1
    %s481 = scalar_lea.sflag [#allocation3], 1
    %482 = vsyncpa %s481, 1
    %483 = vsyncpa [#allocation5], 1

</llo_original>
